<compile_context>
chip_gen: v5e
topology: v5e:2x2
jax: 0.10.0
libtpu: 0.0.40
codegen_flags: <defaults>
</compile_context>

<pallas_src>
import math
from functools import partial

import jax
import jax.numpy as jnp
from jax.experimental import pallas as pl
from jax.experimental.pallas import tpu as pltpu


def _mp_add_kernel(x_ref, r_ref, o_ref, *, a, b):
    # Compute in f32 (no-op cast for f32 inputs), cast back on store.
    x = x_ref[...].astype(jnp.float32)
    r = r_ref[...].astype(jnp.float32)
    o_ref[...] = (x * a + r * b).astype(o_ref.dtype)


def _round_up(v, m):
    return ((v + m - 1) // m) * m


def _mp_add_2d(xf, rf, a, b, target_block_bytes, alias_x=False):
    """Run the elementwise kernel over a lane-dense (rows, lane) slab."""
    rows, lane = xf.shape
    itemsize = jnp.dtype(xf.dtype).itemsize
    # Sublane packing multiple per dtype: 8 for 4-byte, 16 for 2-byte, 32 for 1-byte.
    sub = max(8, 32 // itemsize)
    total_bytes = rows * lane * itemsize

    # Target rows per block from the byte budget, rounded down to the sublane
    # multiple; fall back to the full extent for small inputs.
    target_rows = max(sub, (target_block_bytes // (lane * itemsize)) // sub * sub)

    if rows <= target_rows:
        block_rows = rows  # full extent -> always layout-legal
    else:
        block_rows = target_rows  # sublane multiple; last block may be partial

    # For anything bigger than ~1 MiB, guarantee >= ~4 blocks so the pipeline
    # (in-DMA / compute / out-DMA overlap) and v7x megacore sharding engage.
    if total_bytes > (1 << 20) and rows > 4 * sub:
        quarter = _round_up(pl.cdiv(rows, 4), sub)
        block_rows = min(block_rows, quarter)

    grid = (pl.cdiv(rows, block_rows),)

    # Scoped VMEM: 2 inputs + 1 output, double-buffered, plus slack.
    block_bytes = block_rows * lane * itemsize
    needed = 3 * 2 * block_bytes
    vmem_limit = int(min(48 << 20, max(32 << 20, needed + needed // 2)))

    io_aliases = {0: 0} if alias_x else {}

    return pl.pallas_call(
        partial(_mp_add_kernel, a=a, b=b),
        out_shape=jax.ShapeDtypeStruct((rows, lane), xf.dtype),
        grid=grid,
        in_specs=[
            pl.BlockSpec((block_rows, lane), lambda i: (i, 0)),
            pl.BlockSpec((block_rows, lane), lambda i: (i, 0)),
        ],
        out_specs=pl.BlockSpec((block_rows, lane), lambda i: (i, 0)),
        input_output_aliases=io_aliases,
        compiler_params=pltpu.CompilerParams(
            dimension_semantics=("parallel",),
            vmem_limit_bytes=vmem_limit,
        ),
    )(xf, rf)


def mp_add(x, res, t, *, target_block_bytes=4 * 1024 * 1024, alias_x=False):
    """Magnitude-preserving add: (x*(1-t) + res*t) / sqrt((1-t)^2 + t^2)."""
    assert x.shape == res.shape and x.dtype == res.dtype
    orig_shape = x.shape
    n = x.size

    # Fold the scalars at trace time: out = x*a + res*b.
    t = float(t)
    den = math.sqrt((1.0 - t) ** 2 + t ** 2)
    a = (1.0 - t) / den
    b = t / den

    if n % 128 != 0:
        # Rare ragged path: kernel on the 128-aligned prefix, plain jnp on the
        # (<128-element) tail. No full-tensor padding copies.
        flat_x = x.reshape(-1)
        flat_r = res.reshape(-1)
        n_main = (n // 128) * 128
        parts = []
        if n_main > 0:
            lane = 128
            for cand in (1024, 512, 256):
                if n_main % cand == 0:
                    lane = cand
                    break
            rows = n_main // lane
            head = _mp_add_2d(
                flat_x[:n_main].reshape(rows, lane),
                flat_r[:n_main].reshape(rows, lane),
                a, b, target_block_bytes, alias_x=False,
            ).reshape(-1)
            parts.append(head)
        tail = (
            flat_x[n_main:].astype(jnp.float32) * a
            + flat_r[n_main:].astype(jnp.float32) * b
        ).astype(x.dtype)
        parts.append(tail)
        return jnp.concatenate(parts).reshape(orig_shape)

    # Hot path: pick the widest lane (multiple of 128) that divides numel ->
    # zero-copy reshape, unmasked lane-dense stores.
    lane = 128
    for cand in (1024, 512, 256, 128):
        if n % cand == 0:
            lane = cand
            break
    rows = n // lane
    xf = x.reshape(rows, lane)
    rf = res.reshape(rows, lane)
    out2d = _mp_add_2d(xf, rf, a, b, target_block_bytes, alias_x=alias_x)
    return out2d.reshape(orig_shape)


def mp_add_ref(x, res, t):
    num = x * (1.0 - t) + res * t
    den = math.sqrt((1.0 - t) ** 2 + t ** 2)
    return num / den


# TODO(synk): biggest remaining win is outside this kernel — fuse MPAdd into
# its elementwise producer/consumer instead of running it as a standalone
# 2-read/1-write HBM stream.

if __name__ == "__main__":
    key = jax.random.PRNGKey(0)
    kx, kr = jax.random.split(key)
    t = 0.3  # module hyperparameter

    # 1) Small NCHW tensor, f32 — zero-copy fast path, single full-extent block.
    shape = (2, 4, 16, 16)
    x = jax.random.normal(kx, shape, dtype=jnp.float32)
    res = jax.random.normal(kr, shape, dtype=jnp.float32)
    out = jax.block_until_ready(mp_add(x, res, t))
    ref = mp_add_ref(x, res, t)
    assert out.shape == ref.shape
    assert jnp.allclose(out, ref, atol=1e-6, rtol=1e-5), "f32 mismatch"

    # 2) Multi-block grid with a partial (masked) last block, forced via a
    #    tiny block budget (12800 elems -> lane=512, rows=25, block_rows=8).
    shape2 = (2, 4, 40, 40)
    x2 = jax.random.normal(kx, shape2, dtype=jnp.float32)
    r2 = jax.random.normal(kr, shape2, dtype=jnp.float32)
    out2 = jax.block_until_ready(mp_add(x2, r2, t, target_block_bytes=16 * 1024))
    assert jnp.allclose(out2, mp_add_ref(x2, r2, t), atol=1e-6, rtol=1e-5), \
        "partial-block mismatch"

    # 3) bf16 inputs — dtype-aware sublane rounding, f32 compute, cast on store.
    xb = x.astype(jnp.bfloat16)
    rb = res.astype(jnp.bfloat16)
    outb = jax.block_until_ready(mp_add(xb, rb, t))
    refb = mp_add_ref(x, res, t)  # f32 reference
    assert jnp.allclose(outb.astype(jnp.float32), refb, atol=5e-2, rtol=5e-2), \
        "bf16 mismatch"

    # 4) Ragged numel (not a multiple of 128) — prefix-kernel + jnp tail path.
    shape4 = (5, 77)  # 385 elems: 384 through the kernel, 1-element tail
    x4 = jax.random.normal(kx, shape4, dtype=jnp.float32)
    r4 = jax.random.normal(kr, shape4, dtype=jnp.float32)
    out4 = jax.block_until_ready(mp_add(x4, r4, t))
    assert jnp.allclose(out4, mp_add_ref(x4, r4, t), atol=1e-6, rtol=1e-5), \
        "ragged mismatch"

    # 5) input_output_aliases path (output reuses x's buffer when donated).
    out5 = jax.block_until_ready(mp_add(x, res, t, alias_x=True))
    assert jnp.allclose(out5, ref, atol=1e-6, rtol=1e-5), "alias mismatch"

    print("KERNEL_OK")
</pallas_src>

<mosaic_0001>
module attributes {stable_mosaic.version = 11 : i64} {
  func.func @_mp_add_kernel(%arg0: i32, %arg1: memref<2x1024xf32, #tpu.memory_space<vmem>>, %arg2: memref<2x1024xf32, #tpu.memory_space<vmem>>, %arg3: memref<2x1024xf32, #tpu.memory_space<vmem>>) attributes {dimension_semantics = [#tpu.dimension_semantics<parallel>], iteration_bounds = array<i64: 1>, scalar_prefetch = 0 : i64, scratch_operands = 0 : i64, tpu.core_type = #tpu.core_type<tc>, window_params = [{transform_indices = @transform_0, window_bounds = array<i64: 2, 1024>}, {transform_indices = @transform_1, window_bounds = array<i64: 2, 1024>}, {transform_indices = @transform_2, window_bounds = array<i64: 2, 1024>}]} {
    %c0 = arith.constant 0 : index
    %c0_0 = arith.constant 0 : index
    %0 = vector.load %arg1[%c0, %c0_0] : memref<2x1024xf32, #tpu.memory_space<vmem>>, vector<2x1024xf32>
    %c0_1 = arith.constant 0 : index
    %c0_2 = arith.constant 0 : index
    %1 = vector.load %arg2[%c0_1, %c0_2] : memref<2x1024xf32, #tpu.memory_space<vmem>>, vector<2x1024xf32>
    %cst = arith.constant 0.919145047 : f32
    %2 = vector.broadcast %cst : f32 to vector<2x1024xf32>
    %3 = arith.mulf %0, %2 : vector<2x1024xf32>
    %cst_3 = arith.constant 0.393919289 : f32
    %4 = vector.broadcast %cst_3 : f32 to vector<2x1024xf32>
    %5 = arith.mulf %1, %4 : vector<2x1024xf32>
    %6 = arith.addf %3, %5 : vector<2x1024xf32>
    %c0_4 = arith.constant 0 : index
    %c0_5 = arith.constant 0 : index
    %7 = vector.load %arg3[%c0_4, %c0_5] : memref<2x1024xf32, #tpu.memory_space<vmem>>, vector<2x1024xf32>
    tpu.vector_store %arg3[%c0_4, %c0_5], %6 {strides = array<i32>} : memref<2x1024xf32, #tpu.memory_space<vmem>>, vector<2x1024xf32>,
    return
  }
  func.func @transform_0(%arg0: i32) -> (i32, i32) {
    %c0_i32 = arith.constant 0 : i32
    %c0_i32_0 = arith.constant 0 : i32
    return %arg0, %c0_i32 : i32, i32
  }
  func.func @transform_1(%arg0: i32) -> (i32, i32) {
    %c0_i32 = arith.constant 0 : i32
    %c0_i32_0 = arith.constant 0 : i32
    return %arg0, %c0_i32 : i32, i32
  }
  func.func @transform_2(%arg0: i32) -> (i32, i32) {
    %c0_i32 = arith.constant 0 : i32
    %c0_i32_0 = arith.constant 0 : i32
    return %arg0, %c0_i32 : i32, i32
  }
}

</mosaic_0001>

<llo_original>
// kernel: tpu_custom_call.1
$region0: #{tpu_custom_call.1}
  #allocation0 [shape = 'u32[]', space=smem, size = 0x4, offset = 0x4, fixed_abs, tag = 'smem constant byte address 0x4 - core index']
  #allocation1 [shape = 'u32[72,128]{1,0:T(1,128)}', space=vmem, size = 0x9000, scoped, tag = 'internal scratch']
  %s0 = inlined_call_operand.hbm [shape: f32[2,1024], index: 0, kind: input, shape index: {}]
  %s1 = inlined_call_operand.hbm [shape: f32[2,1024], index: 1, kind: input, shape index: {}]
  %s2 = inlined_call_operand.hbm [shape: f32[2,1024], index: 2, kind: output, shape index: {}]
  %s3 = sld [smem:[#allocation0]]
  $region26: #{tpu_custom_call.1} parent=0
    _
  %s5 = ssub.s32 1, %s3
  %s6 = scalar_select 0, %s5, %s3
  $region1: #{tpu_custom_call.1} parent=0
    #allocation2 [shape = 'u8[8192]{0}', space=vmem, size = 0x2000, scoped, tag = 'input window, operand 0, single buffered']
    #allocation3 [shape = 's32[1]{0}', space=sflag, size = 0x4, scoped, tag = 'scoped memory for tpu_custom_call.1']
    #allocation4 [shape = 's32[1]{0}', space=sflag, size = 0x4, scoped, tag = 'scoped memory for tpu_custom_call.1']
    #allocation5 [shape = 'u8[8192]{0}', space=vmem, size = 0x2000, scoped, tag = 'input window, operand 1, single buffered']
    #allocation6 [shape = 's32[1]{0}', space=sflag, size = 0x4, scoped, tag = 'scoped memory for tpu_custom_call.1']
    #allocation7 [shape = 'u8[8192]{0}', space=vmem, size = 0x2000, scoped, tag = 'output window, operand 0, single buffered']
    %7 = vsyncpa [#allocation3], 0
    %8 = vsyncpa [#allocation6], 0
    %9 = vsyncpa [#allocation4], 0
    // Predicated region
    $region2: #{tpu_custom_call.1} parent=1 // pred_check
      _
    $region3: #{tpu_custom_call.1} parent=1 // pred_check_branch
      %11 = sbr.rel (0) target = $region5
    $region4: #{tpu_custom_call.1} parent=1 // pred_region
      %13 = vsyncadd [#allocation3], 0
      %s15 = sshll.u32 %s0, 4
      %s16 = int_to_ptr.hbm [resolvable:$true] %s15
      %s17 = sshll.u32 [#allocation2], 4
      %s18 = int_to_ptr.vmem [resolvable:$true] %s17
      %20 = dma.hbm_to_vmem [thread:$0]  %s16, 256, %s18, [#allocation3]
    $region5: #{tpu_custom_call.1} parent=1 // pred_fallthru
      _
    // Predicated region
    $region6: #{tpu_custom_call.1} parent=1 // pred_check
      _
    $region7: #{tpu_custom_call.1} parent=1 // pred_check_branch
      %22 = sbr.rel (0) target = $region9
    $region8: #{tpu_custom_call.1} parent=1 // pred_region
      %24 = vsyncadd [#allocation6], 0
      %s26 = sshll.u32 %s1, 4
      %s27 = int_to_ptr.hbm [resolvable:$true] %s26
      %s28 = sshll.u32 [#allocation5], 4
      %s29 = int_to_ptr.vmem [resolvable:$true] %s28
      %31 = dma.hbm_to_vmem [thread:$0]  %s27, 256, %s29, [#allocation6]
    $region9: #{tpu_custom_call.1} parent=1 // pred_fallthru
      _
    // Predicated region
    $region10: #{tpu_custom_call.1} parent=1 // pred_check
      _
    $region11: #{tpu_custom_call.1} parent=1 // pred_check_branch
      %33 = sbr.rel (0) target = $region13
    $region12: #{tpu_custom_call.1} parent=1 // pred_region
      %35 = dma.done [#allocation3], 256
    $region13: #{tpu_custom_call.1} parent=1 // pred_fallthru
      _
    // Predicated region
    $region14: #{tpu_custom_call.1} parent=1 // pred_check
      _
    $region15: #{tpu_custom_call.1} parent=1 // pred_check_branch
      %37 = sbr.rel (0) target = $region17
    $region16: #{tpu_custom_call.1} parent=1 // pred_region
      %39 = dma.done [#allocation6], 256
    $region17: #{tpu_custom_call.1} parent=1 // pred_fallthru
      _
    %v40 = vld [vmem:[#allocation2] sm:$0xff]
    %v41 = vld [vmem:[#allocation2 + $0x8] sm:$0xff]
    %v42 = vld [vmem:[#allocation5] sm:$0xff]
    %v43 = vld [vmem:[#allocation5 + $0x8] sm:$0xff]
    %v44 = vmul.f32 %v40, 0.91914505
    %v45 = vmul.f32 %v41, 0.91914505
    %v46 = vmul.f32 %v42, 0.3939193
    %v47 = vmul.f32 %v43, 0.3939193
    %v48 = vadd.f32 %v44, %v46
    %v49 = vadd.f32 %v45, %v47
    %50 = vst [vmem:[#allocation7] sm:$0xff] %v48
    %51 = vst [vmem:[#allocation7 + $0x8] sm:$0xff] %v49
    // Predicated region
    $region18: #{tpu_custom_call.1} parent=1 // pred_check
      _
    $region19: #{tpu_custom_call.1} parent=1 // pred_check_branch
      %53 = sbr.rel (0) target = $region21
    $region20: #{tpu_custom_call.1} parent=1 // pred_region
      %55 = vsyncadd [#allocation4], 0
      %s57 = sshll.u32 [#allocation7], 4
      %s58 = int_to_ptr.vmem [resolvable:$true] %s57
      %s59 = sshll.u32 %s2, 4
      %s60 = int_to_ptr.hbm [resolvable:$true] %s59
      %62 = dma.vmem_to_hbm [thread:$0]  %s58, 256, %s60, [#allocation4]
    $region21: #{tpu_custom_call.1} parent=1 // pred_fallthru
      _
    // Predicated region
    $region22: #{tpu_custom_call.1} parent=1 // pred_check
      _
    $region23: #{tpu_custom_call.1} parent=1 // pred_check_branch
      %64 = sbr.rel (0) target = $region25
    $region24: #{tpu_custom_call.1} parent=1 // pred_region
      %66 = dma.done [#allocation4], 256
    $region25: #{tpu_custom_call.1} parent=1 // pred_fallthru
      _
    %67 = vsyncpa [#allocation3], 1
    %68 = vsyncpa [#allocation6], 1
    %69 = vsyncpa [#allocation4], 1

</llo_original>
